<compile_context>
chip_gen: v6e
topology: v6e:2x2x1
jax: 0.10.0
libtpu: 0.0.40
codegen_flags: <defaults>
</compile_context>

<pallas_src>
import functools

import jax
import jax.numpy as jnp
from jax.experimental import pallas as pl
from jax.experimental.pallas import tpu as pltpu


def _round_up(x, m):
    return -(-x // m) * m


def _c620_mlp_kernel(x_ref, w1_ref, b1_ref, w2_ref, b2_ref, w3_ref, b3_ref,
                     out_ref):
    """Fused 3-layer MLP: relu(relu(x @ W1 + b1) @ W2 + b2) @ W3 + b3."""
    w1 = w1_ref[...]
    cdt = w1.dtype                       # compute dtype (bf16 by default)

    # Layer 1: single K=(c_dim+f_dim) dot on the pre-concatenated input.
    h = jnp.dot(x_ref[...], w1, preferred_element_type=jnp.float32)
    h = jnp.maximum(h + b1_ref[...], 0.0).astype(cdt)        # bias + ReLU

    # Layer 2.
    h = jnp.dot(h, w2_ref[...], preferred_element_type=jnp.float32)
    h = jnp.maximum(h + b2_ref[...], 0.0).astype(cdt)        # bias + ReLU

    # Output layer.
    out = jnp.dot(h, w3_ref[...], preferred_element_type=jnp.float32)
    out_ref[...] = (out + b3_ref[...]).astype(out_ref.dtype)


def c620_op_forward(c, f, w1, b1, w2, b2, w3, b3, *,
                    compute_dtype=jnp.bfloat16, max_row_tile=4096):
    """Pallas implementation of C620_OP.forward.

    c: (..., c_dim), f: (..., f_dim)
    w1: (c_dim + f_dim, h_dim), b1: (h_dim,)
    w2: (h_dim, h_dim),         b2: (h_dim,)
    w3: (h_dim, o_dim),         b3: (o_dim,)
    returns: (..., o_dim) in c.dtype
    """
    c_dim = c.shape[-1]
    f_dim = f.shape[-1]
    in_dim = c_dim + f_dim
    h_dim = w1.shape[1]
    o_dim = w3.shape[1]
    out_dtype = c.dtype

    lead = c.shape[:-1]
    B = 1
    for d in lead:
        B *= d
    if B == 0:                                  # degenerate batch guard
        return jnp.zeros((*lead, o_dim), out_dtype)

    # Fold the concat into the (already required) cast: concat + convert fuse
    # into a single XLA pass, and layer 1 becomes one K=in_dim dot.
    x = jnp.concatenate([c.reshape(B, c_dim), f.reshape(B, f_dim)],
                        axis=-1).astype(compute_dtype)

    w1c = w1.astype(compute_dtype)
    w2c = w2.astype(compute_dtype)
    w3c = w3.astype(compute_dtype)
    # Biases stay f32 (added to the f32 accumulator); 2-D slabs for layout.
    b1_2 = b1.reshape(1, h_dim).astype(jnp.float32)
    b2_2 = b2.reshape(1, h_dim).astype(jnp.float32)
    b3_2 = b3.reshape(1, o_dim).astype(jnp.float32)

    # Batch tile: as large as allowed (amortize ~0.35us/step grid overhead),
    # multiple of 8 (sublane), capped so the grid keeps >= 2 parallel steps
    # whenever possible (v7x megacore).  No padding: Pallas masks the partial
    # tail block on both the input read and the output write.
    row_tile = max(8, min(_round_up(max_row_tile, 8), _round_up(-(-B // 2), 8)))
    grid = (pl.cdiv(B, row_tile),)

    def batched(n):
        return pl.BlockSpec((row_tile, n), lambda i: (i, 0))

    def resident(shape):
        # Same block index every grid step -> stays resident in VMEM.
        return pl.BlockSpec(shape, lambda i: (0, 0))

    c_item = jnp.dtype(compute_dtype).itemsize
    o_item = jnp.dtype(out_dtype).itemsize
    n_weight = in_dim * h_dim + h_dim * h_dim + h_dim * o_dim
    n_bias = 2 * h_dim + o_dim

    flops = 2 * B * n_weight
    bytes_accessed = (B * in_dim * c_item + B * o_dim * o_item
                      + n_weight * c_item + n_bias * 4)

    # VMEM budget: double-buffered streamed blocks + resident weights + f32
    # hidden intermediates + margin; clamp to <= 48 MiB (v7x has 64 MiB).
    vmem_bytes = int(
        2 * row_tile * in_dim * c_item          # x block, double-buffered
        + 2 * row_tile * o_dim * o_item         # out block, double-buffered
        + 2 * (n_weight + n_bias) * 4           # weights/biases (generous)
        + 3 * row_tile * h_dim * 4              # f32 hidden intermediates
        + (4 << 20))                            # margin
    vmem_bytes = min(max(vmem_bytes, 16 << 20), 48 << 20)

    out = pl.pallas_call(
        _c620_mlp_kernel,
        out_shape=jax.ShapeDtypeStruct((B, o_dim), out_dtype),
        grid_spec=pltpu.PrefetchScalarGridSpec(
            num_scalar_prefetch=0,
            grid=grid,
            in_specs=[
                batched(in_dim),                # x = cat(c, f) tile
                resident((in_dim, h_dim)),      # W1
                resident((1, h_dim)),           # b1
                resident((h_dim, h_dim)),       # W2
                resident((1, h_dim)),           # b2
                resident((h_dim, o_dim)),       # W3
                resident((1, o_dim)),           # b3
            ],
            out_specs=batched(o_dim),
        ),
        compiler_params=pltpu.CompilerParams(
            dimension_semantics=("parallel",),
            vmem_limit_bytes=vmem_bytes),
        cost_estimate=pl.CostEstimate(
            flops=flops, transcendentals=0, bytes_accessed=bytes_accessed),
    )(x, w1c, b1_2, w2c, b2_2, w3c, b3_2)

    return out.reshape(*lead, o_dim)


if __name__ == "__main__":
    # Module defaults: c_dim=3, f_dim=41, o_dim=9, h_dim=128.
    c_dim, f_dim, o_dim, h_dim = 3, 41, 9, 128

    key = jax.random.PRNGKey(0)
    kc, kf, k1, kb1, k2, kb2, k3, kb3 = jax.random.split(key, 8)

    # Small shapes: leading dims (2, 8) -> flattened batch of 16.
    c = jax.random.normal(kc, (2, 8, c_dim), dtype=jnp.float32)
    f = jax.random.normal(kf, (2, 8, f_dim), dtype=jnp.float32)

    scale = 0.1
    w1 = scale * jax.random.normal(k1, (c_dim + f_dim, h_dim), dtype=jnp.float32)
    b1 = scale * jax.random.normal(kb1, (h_dim,), dtype=jnp.float32)
    w2 = scale * jax.random.normal(k2, (h_dim, h_dim), dtype=jnp.float32)
    b2 = scale * jax.random.normal(kb2, (h_dim,), dtype=jnp.float32)
    w3 = scale * jax.random.normal(k3, (h_dim, o_dim), dtype=jnp.float32)
    b3 = scale * jax.random.normal(kb3, (o_dim,), dtype=jnp.float32)

    # Pure-JAX reference matching the PyTorch forward exactly (f32).
    def ref_fn(cc, ff):
        xx = jnp.concatenate([cc, ff], axis=-1)
        hh = jax.nn.relu(xx @ w1 + b1)
        hh = jax.nn.relu(hh @ w2 + b2)
        return hh @ w3 + b3

    fwd = jax.jit(c620_op_forward,
                  static_argnames=("compute_dtype", "max_row_tile"))

    # Default (performance) path: bf16 operands, f32 accumulation.
    out_bf16 = jax.block_until_ready(fwd(c, f, w1, b1, w2, b2, w3, b3))
    ref = ref_fn(c, f)
    assert out_bf16.shape == (2, 8, o_dim) and out_bf16.dtype == jnp.float32
    assert jnp.allclose(out_bf16, ref, atol=5e-2, rtol=5e-2)

    # Exact-numerics (f32) path on a ragged batch (B=20, not a multiple of the
    # tile) to exercise the no-padding / masked tail-block path.
    c2 = jax.random.normal(kc, (20, c_dim), dtype=jnp.float32)
    f2 = jax.random.normal(kf, (20, f_dim), dtype=jnp.float32)
    out_f32 = jax.block_until_ready(
        fwd(c2, f2, w1, b1, w2, b2, w3, b3, compute_dtype=jnp.float32))
    ref2 = ref_fn(c2, f2)
    assert out_f32.shape == (20, o_dim) and out_f32.dtype == jnp.float32
    assert jnp.allclose(out_f32, ref2, atol=1e-4, rtol=1e-4)

    print("KERNEL_OK")
</pallas_src>

<mosaic_0001>
module attributes {stable_mosaic.version = 11 : i64} {
  func.func @_c620_mlp_kernel(%arg0: i32, %arg1: memref<8x44xbf16, #tpu.memory_space<vmem>>, %arg2: memref<44x128xbf16, #tpu.memory_space<vmem>>, %arg3: memref<1x128xf32, #tpu.memory_space<vmem>>, %arg4: memref<128x128xbf16, #tpu.memory_space<vmem>>, %arg5: memref<1x128xf32, #tpu.memory_space<vmem>>, %arg6: memref<128x9xbf16, #tpu.memory_space<vmem>>, %arg7: memref<1x9xf32, #tpu.memory_space<vmem>>, %arg8: memref<8x9xf32, #tpu.memory_space<vmem>>) attributes {dimension_semantics = [#tpu.dimension_semantics<parallel>], iteration_bounds = array<i64: 2>, scalar_prefetch = 0 : i64, scratch_operands = 0 : i64, tpu.core_type = #tpu.core_type<tc>, window_params = [{transform_indices = @transform_0, window_bounds = array<i64: 8, 44>}, {pipeline_mode = #tpu.pipeline_mode<synchronous>, transform_indices = @transform_1, window_bounds = array<i64: 44, 128>}, {pipeline_mode = #tpu.pipeline_mode<synchronous>, transform_indices = @transform_2, window_bounds = array<i64: 1, 128>}, {pipeline_mode = #tpu.pipeline_mode<synchronous>, transform_indices = @transform_3, window_bounds = array<i64: 128, 128>}, {pipeline_mode = #tpu.pipeline_mode<synchronous>, transform_indices = @transform_4, window_bounds = array<i64: 1, 128>}, {pipeline_mode = #tpu.pipeline_mode<synchronous>, transform_indices = @transform_5, window_bounds = array<i64: 128, 9>}, {pipeline_mode = #tpu.pipeline_mode<synchronous>, transform_indices = @transform_6, window_bounds = array<i64: 1, 9>}, {transform_indices = @transform_7, window_bounds = array<i64: 8, 9>}]} {
    %c0 = arith.constant 0 : index
    %c0_0 = arith.constant 0 : index
    %0 = vector.load %arg2[%c0, %c0_0] : memref<44x128xbf16, #tpu.memory_space<vmem>>, vector<44x128xbf16>
    %c0_1 = arith.constant 0 : index
    %c0_2 = arith.constant 0 : index
    %1 = vector.load %arg1[%c0_1, %c0_2] : memref<8x44xbf16, #tpu.memory_space<vmem>>, vector<8x44xbf16>
    %cst = arith.constant dense<0.000000e+00> : vector<8x128xf32>
    %2 = tpu.matmul %1, %0, %cst {dimension_numbers = #tpu.dot_dimension_numbers<[1], [0], [0], [1], [0, 0, 1, 1], [], []>} : vector<8x44xbf16>, vector<44x128xbf16>, vector<8x128xf32> -> vector<8x128xf32>
    %c0_3 = arith.constant 0 : index
    %c0_4 = arith.constant 0 : index
    %3 = vector.load %arg3[%c0_3, %c0_4] : memref<1x128xf32, #tpu.memory_space<vmem>>, vector<1x128xf32>
    %4 = vector.broadcast %3 : vector<1x128xf32> to vector<8x128xf32>
    %5 = arith.addf %2, %4 : vector<8x128xf32>
    %cst_5 = arith.constant 0.000000e+00 : f32
    %6 = vector.broadcast %cst_5 : f32 to vector<8x128xf32>
    %7 = arith.maximumf %5, %6 : vector<8x128xf32>
    %8 = arith.truncf %7 : vector<8x128xf32> to vector<8x128xbf16>
    %c0_6 = arith.constant 0 : index
    %c0_7 = arith.constant 0 : index
    %9 = vector.load %arg4[%c0_6, %c0_7] : memref<128x128xbf16, #tpu.memory_space<vmem>>, vector<128x128xbf16>
    %cst_8 = arith.constant dense<0.000000e+00> : vector<8x128xf32>
    %10 = tpu.matmul %8, %9, %cst_8 {dimension_numbers = #tpu.dot_dimension_numbers<[1], [0], [0], [1], [0, 0, 1, 1], [], []>} : vector<8x128xbf16>, vector<128x128xbf16>, vector<8x128xf32> -> vector<8x128xf32>
    %c0_9 = arith.constant 0 : index
    %c0_10 = arith.constant 0 : index
    %11 = vector.load %arg5[%c0_9, %c0_10] : memref<1x128xf32, #tpu.memory_space<vmem>>, vector<1x128xf32>
    %12 = vector.broadcast %11 : vector<1x128xf32> to vector<8x128xf32>
    %13 = arith.addf %10, %12 : vector<8x128xf32>
    %cst_11 = arith.constant 0.000000e+00 : f32
    %14 = vector.broadcast %cst_11 : f32 to vector<8x128xf32>
    %15 = arith.maximumf %13, %14 : vector<8x128xf32>
    %16 = arith.truncf %15 : vector<8x128xf32> to vector<8x128xbf16>
    %c0_12 = arith.constant 0 : index
    %c0_13 = arith.constant 0 : index
    %17 = vector.load %arg6[%c0_12, %c0_13] : memref<128x9xbf16, #tpu.memory_space<vmem>>, vector<128x9xbf16>
    %cst_14 = arith.constant dense<0.000000e+00> : vector<8x9xf32>
    %18 = tpu.matmul %16, %17, %cst_14 {dimension_numbers = #tpu.dot_dimension_numbers<[1], [0], [0], [1], [0, 0, 1, 1], [], []>} : vector<8x128xbf16>, vector<128x9xbf16>, vector<8x9xf32> -> vector<8x9xf32>
    %c0_15 = arith.constant 0 : index
    %c0_16 = arith.constant 0 : index
    %19 = vector.load %arg7[%c0_15, %c0_16] : memref<1x9xf32, #tpu.memory_space<vmem>>, vector<1x9xf32>
    %20 = vector.broadcast %19 : vector<1x9xf32> to vector<8x9xf32>
    %21 = arith.addf %18, %20 : vector<8x9xf32>
    %c0_17 = arith.constant 0 : index
    %c0_18 = arith.constant 0 : index
    %22 = vector.load %arg8[%c0_17, %c0_18] : memref<8x9xf32, #tpu.memory_space<vmem>>, vector<8x9xf32>
    tpu.vector_store %arg8[%c0_17, %c0_18], %21 {strides = array<i32>} : memref<8x9xf32, #tpu.memory_space<vmem>>, vector<8x9xf32>,
    return
  }
  func.func @transform_0(%arg0: i32) -> (i32, i32) {
    %c0_i32 = arith.constant 0 : i32
    %c0_i32_0 = arith.constant 0 : i32
    return %arg0, %c0_i32 : i32, i32
  }
  func.func @transform_1(%arg0: i32) -> (i32, i32) {
    %c0_i32 = arith.constant 0 : i32
    %c0_i32_0 = arith.constant 0 : i32
    %c0_i32_1 = arith.constant 0 : i32
    return %c0_i32, %c0_i32_0 : i32, i32
  }
  func.func @transform_2(%arg0: i32) -> (i32, i32) {
    %c0_i32 = arith.constant 0 : i32
    %c0_i32_0 = arith.constant 0 : i32
    %c0_i32_1 = arith.constant 0 : i32
    return %c0_i32, %c0_i32_0 : i32, i32
  }
  func.func @transform_3(%arg0: i32) -> (i32, i32) {
    %c0_i32 = arith.constant 0 : i32
    %c0_i32_0 = arith.constant 0 : i32
    %c0_i32_1 = arith.constant 0 : i32
    return %c0_i32, %c0_i32_0 : i32, i32
  }
  func.func @transform_4(%arg0: i32) -> (i32, i32) {
    %c0_i32 = arith.constant 0 : i32
    %c0_i32_0 = arith.constant 0 : i32
    %c0_i32_1 = arith.constant 0 : i32
    return %c0_i32, %c0_i32_0 : i32, i32
  }
  func.func @transform_5(%arg0: i32) -> (i32, i32) {
    %c0_i32 = arith.constant 0 : i32
    %c0_i32_0 = arith.constant 0 : i32
    %c0_i32_1 = arith.constant 0 : i32
    return %c0_i32, %c0_i32_0 : i32, i32
  }
  func.func @transform_6(%arg0: i32) -> (i32, i32) {
    %c0_i32 = arith.constant 0 : i32
    %c0_i32_0 = arith.constant 0 : i32
    %c0_i32_1 = arith.constant 0 : i32
    return %c0_i32, %c0_i32_0 : i32, i32
  }
  func.func @transform_7(%arg0: i32) -> (i32, i32) {
    %c0_i32 = arith.constant 0 : i32
    %c0_i32_0 = arith.constant 0 : i32
    return %arg0, %c0_i32 : i32, i32
  }
}

</mosaic_0001>

<llo_original>
// kernel: c620_op_forward.1
$region0: #{c620_op_forward.1}
  #allocation0 [shape = 'u32[]', space=smem, size = 0x4, offset = 0x4, fixed_abs, tag = 'smem constant byte address 0x4 - core index']
  #allocation1 [shape = 'u32[144,128]{1,0:T(1,128)}', space=vmem, size = 0x12000, scoped, tag = 'internal scratch']
  %s0 = inlined_call_operand.vmem [shape: bf16[16,44], index: 0, kind: input, shape index: {}]
  %s1 = inlined_call_operand.vmem [shape: bf16[44,128], index: 1, kind: input, shape index: {}]
  %s2 = inlined_call_operand.vmem [shape: f32[1,128], index: 2, kind: input, shape index: {}]
  %s3 = inlined_call_operand.vmem [shape: bf16[128,128], index: 3, kind: input, shape index: {}]
  %s4 = inlined_call_operand.vmem [shape: f32[1,128], index: 4, kind: input, shape index: {}]
  %s5 = inlined_call_operand.vmem [shape: bf16[128,9], index: 5, kind: input, shape index: {}]
  %s6 = inlined_call_operand.vmem [shape: f32[1,9], index: 6, kind: input, shape index: {}]
  %s7 = inlined_call_operand.hbm [shape: f32[16,9], index: 7, kind: output, shape index: {}]
  %s8 = sld [smem:[#allocation0]]
  $region61: #{c620_op_forward.1} parent=0
    _
  %s10 = ssub.s32 1, %s8
  %s11 = scalar_select 0, %s10, %s8
  $region1: #{c620_op_forward.1} parent=0
    #allocation2 [shape = 'u8[8192]{0}', space=vmem, size = 0x2000, scoped, tag = 'output window, operand 0']
    #allocation3 [shape = 's32[2]{0}', space=sflag, size = 0x8, scoped, tag = 'scoped memory for c620_op_forward.1']
    %12 = vsyncpa [#allocation3], 0
    %s13 = scalar_lea.sflag [#allocation3], 1
    %14 = vsyncpa %s13, 0
    loop: start=0, step=1, limit=4
    $region2: #{c620_op_forward.1} parent=1 // loop_pre_header
      _
    $region3: #{c620_op_forward.1} parent=1 // loop_header
      %s16 = sphi 0, %s20
      %p17 = scmp.ge.s32.totalorder %s16, 4
      %s26 = sphi 0, %s28
      %s29 = sphi 0, %s26
      %s30 = sphi 0, %s29
      %s46 = sphi 0, %s30
      %s50 = sphi 0, %s50
      %s52 = sphi 0, %s50
      %s53 = sphi 0, %s52
      %s67 = sphi 0, %s53
      %s71 = sphi 0, %s71
      %s73 = sphi 0, %s71
      %s74 = sphi 0, %s73
      %s88 = sphi 0, %s74
      %s92 = sphi 0, %s92
      %s94 = sphi 0, %s92
      %s95 = sphi 0, %s94
      %s109 = sphi 0, %s95
      %s113 = sphi 0, %s113
      %s115 = sphi 0, %s113
      %s116 = sphi 0, %s115
      %s130 = sphi 0, %s116
      %s134 = sphi 0, %s134
      %s136 = sphi 0, %s134
      %s137 = sphi 0, %s136
      %s151 = sphi 0, %s137
      %s155 = sphi 0, %s155
      %s157 = sphi 0, %s155
      %s158 = sphi 0, %s157
      %s172 = sphi 0, %s158
      %s178 = sphi 0, %s180
      %s181 = sphi 0, %s178
      %s182 = sphi 0, %s181
      %s198 = sphi 0, %s182
    $region4: #{c620_op_forward.1} parent=1 // loop_header_branch
      %19 = sbr.rel (%p17) target = $region8
    $region5: #{c620_op_forward.1} parent=1 // loop_body
      %s21 = ssub.s32 %s16, 1
      %s22 = ssub.s32 %s16, 2
      %s23 = sadd.s32 %s16, 1
      %s24 = ssub.s32 %s16, %s23
      %p25 = scmp.eq.s32.totalorder %s24, 0
      %s27 = sadd.s32 %s26, 1
      %s28 = scalar_select %p25, %s26, %s27
      %p31 = pneg %p25
      %p32 = scmp.eq.s32.totalorder %s16, 1
      %p33 = por %p31, %p32
      %p34 = scmp.ne.s32.totalorder %s26, %s29
      %p35 = scmp.eq.s32.totalorder %s16, 0
      %p36 = por %p34, %p35
      %p37 = scmp.ne.s32.totalorder %s26, %s29
      %p38 = scmp.eq.s32.totalorder %s21, 1
      %p39 = por %p37, %p38
      %p40 = scmp.ne.s32.totalorder %s29, %s30
      %p41 = scmp.eq.s32.totalorder %s21, 0
      %p42 = por %p40, %p41
      %p43 = scmp.ne.s32.totalorder %s29, %s30
      %p44 = scmp.eq.s32.totalorder %s22, 1
      %p45 = por %p43, %p44
      %p47 = scmp.ne.s32.totalorder %s30, %s46
      %p48 = scmp.eq.s32.totalorder %s22, 0
      %p49 = por %p47, %p48
      %s51 = sadd.s32 %s50, 1
      %p54 = scmp.eq.s32.totalorder %s16, 1
      %p55 = scmp.ne.s32.totalorder %s50, %s52
      %p56 = scmp.eq.s32.totalorder %s16, 0
      %p57 = por %p55, %p56
      %p58 = scmp.ne.s32.totalorder %s50, %s52
      %p59 = scmp.eq.s32.totalorder %s21, 1
      %p60 = por %p58, %p59
      %p61 = scmp.ne.s32.totalorder %s52, %s53
      %p62 = scmp.eq.s32.totalorder %s21, 0
      %p63 = por %p61, %p62
      %p64 = scmp.ne.s32.totalorder %s52, %s53
      %p65 = scmp.eq.s32.totalorder %s22, 1
      %p66 = por %p64, %p65
      %p68 = scmp.ne.s32.totalorder %s53, %s67
      %p69 = scmp.eq.s32.totalorder %s22, 0
      %p70 = por %p68, %p69
      %s72 = sadd.s32 %s71, 1
      %p75 = scmp.eq.s32.totalorder %s16, 1
      %p76 = scmp.ne.s32.totalorder %s71, %s73
      %p77 = scmp.eq.s32.totalorder %s16, 0
      %p78 = por %p76, %p77
      %p79 = scmp.ne.s32.totalorder %s71, %s73
      %p80 = scmp.eq.s32.totalorder %s21, 1
      %p81 = por %p79, %p80
      %p82 = scmp.ne.s32.totalorder %s73, %s74
      %p83 = scmp.eq.s32.totalorder %s21, 0
      %p84 = por %p82, %p83
      %p85 = scmp.ne.s32.totalorder %s73, %s74
      %p86 = scmp.eq.s32.totalorder %s22, 1
      %p87 = por %p85, %p86
      %p89 = scmp.ne.s32.totalorder %s74, %s88
      %p90 = scmp.eq.s32.totalorder %s22, 0
      %p91 = por %p89, %p90
      %s93 = sadd.s32 %s92, 1
      %p96 = scmp.eq.s32.totalorder %s16, 1
      %p97 = scmp.ne.s32.totalorder %s92, %s94
      %p98 = scmp.eq.s32.totalorder %s16, 0
      %p99 = por %p97, %p98
      %p100 = scmp.ne.s32.totalorder %s92, %s94
      %p101 = scmp.eq.s32.totalorder %s21, 1
      %p102 = por %p100, %p101
      %p103 = scmp.ne.s32.totalorder %s94, %s95
      %p104 = scmp.eq.s32.totalorder %s21, 0
      %p105 = por %p103, %p104
      %p106 = scmp.ne.s32.totalorder %s94, %s95
      %p107 = scmp.eq.s32.totalorder %s22, 1
      %p108 = por %p106, %p107
      %p110 = scmp.ne.s32.totalorder %s95, %s109
      %p111 = scmp.eq.s32.totalorder %s22, 0
      %p112 = por %p110, %p111
      %s114 = sadd.s32 %s113, 1
      %p117 = scmp.eq.s32.totalorder %s16, 1
      %p118 = scmp.ne.s32.totalorder %s113, %s115
      %p119 = scmp.eq.s32.totalorder %s16, 0
      %p120 = por %p118, %p119
      %p121 = scmp.ne.s32.totalorder %s113, %s115
      %p122 = scmp.eq.s32.totalorder %s21, 1
      %p123 = por %p121, %p122
      %p124 = scmp.ne.s32.totalorder %s115, %s116
      %p125 = scmp.eq.s32.totalorder %s21, 0
      %p126 = por %p124, %p125
      %p127 = scmp.ne.s32.totalorder %s115, %s116
      %p128 = scmp.eq.s32.totalorder %s22, 1
      %p129 = por %p127, %p128
      %p131 = scmp.ne.s32.totalorder %s116, %s130
      %p132 = scmp.eq.s32.totalorder %s22, 0
      %p133 = por %p131, %p132
      %s135 = sadd.s32 %s134, 1
      %p138 = scmp.eq.s32.totalorder %s16, 1
      %p139 = scmp.ne.s32.totalorder %s134, %s136
      %p140 = scmp.eq.s32.totalorder %s16, 0
      %p141 = por %p139, %p140
      %p142 = scmp.ne.s32.totalorder %s134, %s136
      %p143 = scmp.eq.s32.totalorder %s21, 1
      %p144 = por %p142, %p143
      %p145 = scmp.ne.s32.totalorder %s136, %s137
      %p146 = scmp.eq.s32.totalorder %s21, 0
      %p147 = por %p145, %p146
      %p148 = scmp.ne.s32.totalorder %s136, %s137
      %p149 = scmp.eq.s32.totalorder %s22, 1
      %p150 = por %p148, %p149
      %p152 = scmp.ne.s32.totalorder %s137, %s151
      %p153 = scmp.eq.s32.totalorder %s22, 0
      %p154 = por %p152, %p153
      %s156 = sadd.s32 %s155, 1
      %p159 = scmp.eq.s32.totalorder %s16, 1
      %p160 = scmp.ne.s32.totalorder %s155, %s157
      %p161 = scmp.eq.s32.totalorder %s16, 0
      %p162 = por %p160, %p161
      %p163 = scmp.ne.s32.totalorder %s155, %s157
      %p164 = scmp.eq.s32.totalorder %s21, 1
      %p165 = por %p163, %p164
      %p166 = scmp.ne.s32.totalorder %s157, %s158
      %p167 = scmp.eq.s32.totalorder %s21, 0
      %p168 = por %p166, %p167
      %p169 = scmp.ne.s32.totalorder %s157, %s158
      %p170 = scmp.eq.s32.totalorder %s22, 1
      %p171 = por %p169, %p170
      %p173 = scmp.ne.s32.totalorder %s158, %s172
      %p174 = scmp.eq.s32.totalorder %s22, 0
      %p175 = por %p173, %p174
      %s176 = ssub.s32 %s16, %s23
      %p177 = scmp.eq.s32.totalorder %s176, 0
      %s179 = sadd.s32 %s178, 1
      %s180 = scalar_select %p177, %s178, %s179
      %p183 = pneg %p177
      %p184 = scmp.eq.s32.totalorder %s16, 1
      %p185 = por %p183, %p184
      %p186 = scmp.ne.s32.totalorder %s178, %s181
      %p187 = scmp.eq.s32.totalorder %s16, 0
      %p188 = por %p186, %p187
      %p189 = scmp.ne.s32.totalorder %s178, %s181
      %p190 = scmp.eq.s32.totalorder %s21, 1
      %p191 = por %p189, %p190
      %p192 = scmp.ne.s32.totalorder %s181, %s182
      %p193 = scmp.eq.s32.totalorder %s21, 0
      %p194 = por %p192, %p193
      %p195 = scmp.ne.s32.totalorder %s181, %s182
      %p196 = scmp.eq.s32.totalorder %s22, 1
      %p197 = por %p195, %p196
      %p199 = scmp.ne.s32.totalorder %s182, %s198
      %p200 = scmp.eq.s32.totalorder %s22, 0
      %p201 = por %p199, %p200
      %p202 = scmp.le.s32.totalorder 1, %s16
      %p203 = scmp.lt.s32.totalorder %s16, 3
      %p204 = pnand %p202, %p203
      %p205 = pneg %p204
      // Predicated region
      $region9: #{c620_op_forward.1} parent=5 // pred_check
        _
      $region10: #{c620_op_forward.1} parent=5 // pred_check_branch
        %207 = sbr.rel (%p204) target = $region12
      $region11: #{c620_op_forward.1} parent=5 // pred_region
        %s208 = ssub.s32 %s16, 1
        // Predicated region
        $region13: #{c620_op_forward.1} parent=11 // pred_check
          %p209 = pneg %p63
        $region14: #{c620_op_forward.1} parent=11 // pred_check_branch
          %211 = sbr.rel (%p209) target = $region16
        $region15: #{c620_op_forward.1} parent=11 // pred_region
          _
        $region16: #{c620_op_forward.1} parent=11 // pred_fallthru
          _
        // Predicated region
        $region17: #{c620_op_forward.1} parent=11 // pred_check
          %p212 = pneg %p84
        $region18: #{c620_op_forward.1} parent=11 // pred_check_branch
          %214 = sbr.rel (%p212) target = $region20
        $region19: #{c620_op_forward.1} parent=11 // pred_region
          _
        $region20: #{c620_op_forward.1} parent=11 // pred_fallthru
          _
        // Predicated region
        $region21: #{c620_op_forward.1} parent=11 // pred_check
          %p215 = pneg %p105
        $region22: #{c620_op_forward.1} parent=11 // pred_check_branch
          %217 = sbr.rel (%p215) target = $region24
        $region23: #{c620_op_forward.1} parent=11 // pred_region
          _
        $region24: #{c620_op_forward.1} parent=11 // pred_fallthru
          _
        // Predicated region
        $region25: #{c620_op_forward.1} parent=11 // pred_check
          %p218 = pneg %p126
        $region26: #{c620_op_forward.1} parent=11 // pred_check_branch
          %220 = sbr.rel (%p218) target = $region28
        $region27: #{c620_op_forward.1} parent=11 // pred_region
          _
        $region28: #{c620_op_forward.1} parent=11 // pred_fallthru
          _
        // Predicated region
        $region29: #{c620_op_forward.1} parent=11 // pred_check
          %p221 = pneg %p147
        $region30: #{c620_op_forward.1} parent=11 // pred_check_branch
          %223 = sbr.rel (%p221) target = $region32
        $region31: #{c620_op_forward.1} parent=11 // pred_region
          _
        $region32: #{c620_op_forward.1} parent=11 // pred_fallthru
          _
        // Predicated region
        $region33: #{c620_op_forward.1} parent=11 // pred_check
          %p224 = pneg %p168
        $region34: #{c620_op_forward.1} parent=11 // pred_check_branch
          %226 = sbr.rel (%p224) target = $region36
        $region35: #{c620_op_forward.1} parent=11 // pred_region
          _
        $region36: #{c620_op_forward.1} parent=11 // pred_fallthru
          _
      $region12: #{c620_op_forward.1} parent=5 // pred_fallthru
        _
      %p227 = scmp.lt.s32.totalorder %s16, 2
      // Predicated region
      $region37: #{c620_op_forward.1} parent=5 // pred_check
        %p228 = pneg %p227
      $region38: #{c620_op_forward.1} parent=5 // pred_check_branch
        %230 = sbr.rel (%p228) target = $region40
      $region39: #{c620_op_forward.1} parent=5 // pred_region
        // Predicated region
        $region41: #{c620_op_forward.1} parent=39 // pred_check
          %p231 = pneg %p36
        $region42: #{c620_op_forward.1} parent=39 // pred_check_branch
          %233 = sbr.rel (%p231) target = $region44
        $region43: #{c620_op_forward.1} parent=39 // pred_region
          %p234 = scmp.lt.s32.totalorder %s16, 1
          %s235 = scalar_select %p234, %s16, 1
          %s236 = smul.addr %s235, 4
          %s237 = scalar_lea.vmem %s0, %s236
        $region44: #{c620_op_forward.1} parent=39 // pred_fallthru
          _
      $region40: #{c620_op_forward.1} parent=5 // pred_fallthru
        _
      %p238 = scmp.le.s32.totalorder 1, %s16
      %p239 = scmp.lt.s32.totalorder %s16, 3
      %p240 = pnand %p238, %p239
      %p241 = pneg %p240
      // Predicated region
      $region45: #{c620_op_forward.1} parent=5 // pred_check
        _
      $region46: #{c620_op_forward.1} parent=5 // pred_check_branch
        %243 = sbr.rel (%p240) target = $region48
      $region47: #{c620_op_forward.1} parent=5 // pred_region
        %s244 = ssub.s32 %s16, 1
        %p245 = scmp.lt.s32.totalorder %s21, 1
        %s246 = scalar_select %p245, %s21, 1
        %s247 = smul.addr %s246, 4
        %s248 = scalar_lea.vmem %s0, %s247
        %p249 = pneg %p42
        %p250 = pneg %p39
        %p251 = pneg %p63
        %p252 = pneg %p60
        %p253 = pneg %p84
        %p254 = pneg %p81
        %p255 = pneg %p105
        %p256 = pneg %p102
        %p257 = pneg %p126
        %p258 = pneg %p123
        %p259 = pneg %p147
        %p260 = pneg %p144
        %p261 = pneg %p168
        %p262 = pneg %p165
        %p263 = pneg %p194
        %p264 = pneg %p191
        %s265 = sand.u32 %s181, 1
        %s266 = scalar_lea.sflag [#allocation3], %s265
        %s267 = sand.u32 %s181, 1
        %s268 = smul.addr %s267, 8
        %s269 = scalar_lea.vmem [#allocation2], %s268
        %p270 = scmp.lt.s32.totalorder %s21, 1
        %s271 = scalar_select %p270, %s21, 1
        %s272 = smul.addr %s271, 4
        %s273 = scalar_lea.vmem %s0, %s272
        %v275 = vld [vmem:[%s1] sm:$0xf]
        %v276 = vld [vmem:[%s1 + $0x4] sm:$0xf]
        %v277 = vld [vmem:[%s1 + $0x8] sm:$0xf]
        %v278 = vld [vmem:[%s1 + $0xc] sm:$0xf]
        %v279 = vld [vmem:[%s1 + $0x10] sm:$0xf]
        %v280 = vld [vmem:[%s1 + $0x14] sm:$0x3]
        %v281 = vld [vmem:[%s273] sm:$0xf]
        %v282 = vld [vmem:[%s2] sm:$0x1]
        %v284 = vlaneseq
        %v285 = vshrl.u32 %v284, 7
        %v286 = vsub.s32 0, %v285
        %v287 = vrot.slane %v282, %v286
        %v295 = vunpack.c.l.b16 %v275
        %v296 = vunpack.c.l.b16 %v276
        %v297 = vunpack.c.l.b16 %v277
        %v298 = vunpack.c.l.b16 %v278
        %v299 = vunpack.c.l.b16 %v279
        %v300 = vunpack.c.l.b16 %v280
        %v301 = vpack.c.b16 %v296, %v295
        %v302 = vpack.c.b16 %v298, %v297
        %v303 = vpack.c.b16 %v300, %v299
        %vm306 = vcmask 359424
        %v308 = vsel %vm306, %v281, 0
        %vm310 = vcmask 1045504
        %v312 = vsel %vm310, %v303, 0
        %314 = vmatprep.subr.bf16.mxu0 0
        %315 = vmatpush1.bf16.msra.mxu0 0
        %316 = vmatprep.subr.bf16.mxu0 0
        %317 = vmatpush1.bf16.msra.mxu0 0
        %318 = vmatprep.subr.bf16.mxu0 0
        %319 = vmatpush1.bf16.msra.mxu0 0
        %320 = vmatprep.subr.bf16.mxu0 0
        %321 = vmatpush1.bf16.msra.mxu0 0
        %322 = vmatprep.subr.bf16.mxu0 0
        %323 = vmatpush1.bf16.msra.mxu0 0
        %324 = vmatprep.subr.bf16.mxu0 0
        %325 = vmatpush1.bf16.msra.mxu0 %v312
        %326 = vmatprep.subr.bf16.mxu0 0
        %327 = vmatpush1.bf16.msra.mxu0 %v302
        %328 = vmatprep.subr.bf16.mxu0 0
        %329 = vmatpush1.bf16.msra.mxu0 %v301
        %330 = vmatprep.subr.bf16.mxu0 0
        %331 = vmatpush2.bf16.msra.mxu0 0
        %332 = vmatprep.subr.bf16.mxu0 0
        %333 = vmatpush2.bf16.msra.mxu0 0
        %334 = vmatprep.subr.bf16.mxu0 0
        %335 = vmatpush2.bf16.msra.mxu0 0
        %336 = vmatprep.subr.bf16.mxu0 0
        %337 = vmatpush2.bf16.msra.mxu0 0
        %338 = vmatprep.subr.bf16.mxu0 0
        %339 = vmatpush2.bf16.msra.mxu0 0
        %340 = vmatprep.subr.bf16.mxu0 0
        %341 = vmatpush2.bf16.msra.mxu0 0
        %342 = vmatprep.subr.bf16.mxu0 0
        %343 = vmatpush2.bf16.msra.mxu0 0
        %344 = vmatprep.subr.bf16.mxu0 0
        %345 = vmatpush2.bf16.msra.mxu0 0
        %346 = vmatprep.mubr.bf16.mxu0 0
        %347 = vmatmul.mubr.bf16.gmra.mxu0 %v308
        %v348 = vpop.f32.mrf.mxu0
        %v349 = vadd.f32 %v287, %v348
        %v350 = vpop.f32.mrf.mxu0
        %v351 = vpop.f32.mrf.mxu0
        %v352 = vpop.f32.mrf.mxu0
        %353 = vdwg.mxu0
        %v354 = vmax.f32 %v349, 0.0
        %v355 = vpack.c.bf16 %v354, %v354
        %v356 = vld [vmem:[%s3] sm:$0xf]
        %v357 = vld [vmem:[%s3 + $0x4] sm:$0xf]
        %v358 = vld [vmem:[%s3 + $0x8] sm:$0xf]
        %v359 = vld [vmem:[%s3 + $0xc] sm:$0xf]
        %v360 = vld [vmem:[%s3 + $0x10] sm:$0xf]
        %v361 = vld [vmem:[%s3 + $0x14] sm:$0xf]
        %v362 = vld [vmem:[%s3 + $0x18] sm:$0xf]
        %v363 = vld [vmem:[%s3 + $0x1c] sm:$0xf]
        %v364 = vld [vmem:[%s3 + $0x20] sm:$0xf]
        %v365 = vld [vmem:[%s3 + $0x24] sm:$0xf]
        %v366 = vld [vmem:[%s3 + $0x28] sm:$0xf]
        %v367 = vld [vmem:[%s3 + $0x2c] sm:$0xf]
        %v368 = vld [vmem:[%s3 + $0x30] sm:$0xf]
        %v369 = vld [vmem:[%s3 + $0x34] sm:$0xf]
        %v370 = vld [vmem:[%s3 + $0x38] sm:$0xf]
        %v371 = vld [vmem:[%s3 + $0x3c] sm:$0xf]
        %v372 = vld [vmem:[%s4] sm:$0x1]
        %v374 = vlaneseq
        %v375 = vshrl.u32 %v374, 7
        %v376 = vsub.s32 0, %v375
        %v377 = vrot.slane %v372, %v376
        %v395 = vunpack.c.l.b16 %v356
        %v396 = vunpack.c.l.b16 %v357
        %v397 = vunpack.c.l.b16 %v358
        %v398 = vunpack.c.l.b16 %v359
        %v399 = vunpack.c.l.b16 %v360
        %v400 = vunpack.c.l.b16 %v361
        %v401 = vunpack.c.l.b16 %v362
        %v402 = vunpack.c.l.b16 %v363
        %v403 = vunpack.c.l.b16 %v364
        %v404 = vunpack.c.l.b16 %v365
        %v405 = vunpack.c.l.b16 %v366
        %v406 = vunpack.c.l.b16 %v367
        %v407 = vunpack.c.l.b16 %v368
        %v408 = vunpack.c.l.b16 %v369
        %v409 = vunpack.c.l.b16 %v370
        %v410 = vunpack.c.l.b16 %v371
        %v411 = vpack.c.b16 %v396, %v395
        %v412 = vpack.c.b16 %v398, %v397
        %v413 = vpack.c.b16 %v400, %v399
        %v414 = vpack.c.b16 %v402, %v401
        %v415 = vpack.c.b16 %v404, %v403
        %v416 = vpack.c.b16 %v406, %v405
        %v417 = vpack.c.b16 %v408, %v407
        %v418 = vpack.c.b16 %v410, %v409
        %427 = vmatprep.subr.bf16.mxu0 0
        %428 = vmatpush1.bf16.msra.mxu0 %v418
        %429 = vmatprep.subr.bf16.mxu0 0
        %430 = vmatpush1.bf16.msra.mxu0 %v417
        %431 = vmatprep.subr.bf16.mxu0 0
        %432 = vmatpush1.bf16.msra.mxu0 %v416
        %433 = vmatprep.subr.bf16.mxu0 0
        %434 = vmatpush1.bf16.msra.mxu0 %v415
        %435 = vmatprep.subr.bf16.mxu0 0
        %436 = vmatpush1.bf16.msra.mxu0 %v414
        %437 = vmatprep.subr.bf16.mxu0 0
        %438 = vmatpush1.bf16.msra.mxu0 %v413
        %439 = vmatprep.subr.bf16.mxu0 0
        %440 = vmatpush1.bf16.msra.mxu0 %v412
        %441 = vmatprep.subr.bf16.mxu0 0
        %442 = vmatpush1.bf16.msra.mxu0 %v411
        %443 = vmatprep.subr.bf16.mxu0 0
        %444 = vmatpush2.bf16.msra.mxu0 0
        %445 = vmatprep.subr.bf16.mxu0 0
        %446 = vmatpush2.bf16.msra.mxu0 0
        %447 = vmatprep.subr.bf16.mxu0 0
        %448 = vmatpush2.bf16.msra.mxu0 0
        %449 = vmatprep.subr.bf16.mxu0 0
        %450 = vmatpush2.bf16.msra.mxu0 0
        %451 = vmatprep.subr.bf16.mxu0 0
        %452 = vmatpush2.bf16.msra.mxu0 0
        %453 = vmatprep.subr.bf16.mxu0 0
        %454 = vmatpush2.bf16.msra.mxu0 0
        %455 = vmatprep.subr.bf16.mxu0 0
        %456 = vmatpush2.bf16.msra.mxu0 0
        %457 = vmatprep.subr.bf16.mxu0 0
        %458 = vmatpush2.bf16.msra.mxu0 0
        %459 = vmatprep.mubr.bf16.mxu0 0
        %460 = vmatmul.mubr.bf16.gmra.mxu0 %v355
        %v461 = vpop.f32.mrf.mxu0
        %v462 = vadd.f32 %v377, %v461
        %v463 = vpop.f32.mrf.mxu0
        %v464 = vpop.f32.mrf.mxu0
        %v465 = vpop.f32.mrf.mxu0
        %466 = vdwg.mxu0
        %v467 = vmax.f32 %v462, 0.0
        %v468 = vpack.c.bf16 %v467, %v467
        %v469 = vld [vmem:[%s5] sm:$0xf]
        %v470 = vld [vmem:[%s5 + $0x4] sm:$0xf]
        %v471 = vld [vmem:[%s5 + $0x8] sm:$0xf]
        %v472 = vld [vmem:[%s5 + $0xc] sm:$0xf]
        %v473 = vld [vmem:[%s5 + $0x10] sm:$0xf]
        %v474 = vld [vmem:[%s5 + $0x14] sm:$0xf]
        %v475 = vld [vmem:[%s5 + $0x18] sm:$0xf]
        %v476 = vld [vmem:[%s5 + $0x1c] sm:$0xf]
        %v477 = vld [vmem:[%s5 + $0x20] sm:$0xf]
        %v478 = vld [vmem:[%s5 + $0x24] sm:$0xf]
        %v479 = vld [vmem:[%s5 + $0x28] sm:$0xf]
        %v480 = vld [vmem:[%s5 + $0x2c] sm:$0xf]
        %v481 = vld [vmem:[%s5 + $0x30] sm:$0xf]
        %v482 = vld [vmem:[%s5 + $0x34] sm:$0xf]
        %v483 = vld [vmem:[%s5 + $0x38] sm:$0xf]
        %v484 = vld [vmem:[%s5 + $0x3c] sm:$0xf]
        %v485 = vld [vmem:[%s6] sm:$0x1]
        %v487 = vlaneseq
        %v488 = vshrl.u32 %v487, 7
        %v489 = vsub.s32 0, %v488
        %v490 = vrot.slane %v485, %v489
        %v508 = vunpack.c.l.b16 %v469
        %v509 = vunpack.c.l.b16 %v470
        %v510 = vunpack.c.l.b16 %v471
        %v511 = vunpack.c.l.b16 %v472
        %v512 = vunpack.c.l.b16 %v473
        %v513 = vunpack.c.l.b16 %v474
        %v514 = vunpack.c.l.b16 %v475
        %v515 = vunpack.c.l.b16 %v476
        %v516 = vunpack.c.l.b16 %v477
        %v517 = vunpack.c.l.b16 %v478
        %v518 = vunpack.c.l.b16 %v479
        %v519 = vunpack.c.l.b16 %v480
        %v520 = vunpack.c.l.b16 %v481
        %v521 = vunpack.c.l.b16 %v482
        %v522 = vunpack.c.l.b16 %v483
        %v523 = vunpack.c.l.b16 %v484
        %v524 = vpack.c.b16 %v509, %v508
        %v525 = vpack.c.b16 %v511, %v510
        %v526 = vpack.c.b16 %v513, %v512
        %v527 = vpack.c.b16 %v515, %v514
        %v528 = vpack.c.b16 %v517, %v516
        %v529 = vpack.c.b16 %v519, %v518
        %v530 = vpack.c.b16 %v521, %v520
        %v531 = vpack.c.b16 %v523, %v522
        %540 = vmatprep.subr.bf16.mxu0 0
        %541 = vmatpush1.bf16.msra.mxu0 %v531
        %542 = vmatprep.subr.bf16.mxu0 0
        %543 = vmatpush1.bf16.msra.mxu0 %v530
        %544 = vmatprep.subr.bf16.mxu0 0
        %545 = vmatpush1.bf16.msra.mxu0 %v529
        %546 = vmatprep.subr.bf16.mxu0 0
        %547 = vmatpush1.bf16.msra.mxu0 %v528
        %548 = vmatprep.subr.bf16.mxu0 0
        %549 = vmatpush1.bf16.msra.mxu0 %v527
        %550 = vmatprep.subr.bf16.mxu0 0
        %551 = vmatpush1.bf16.msra.mxu0 %v526
        %552 = vmatprep.subr.bf16.mxu0 0
        %553 = vmatpush1.bf16.msra.mxu0 %v525
        %554 = vmatprep.subr.bf16.mxu0 0
        %555 = vmatpush1.bf16.msra.mxu0 %v524
        %556 = vmatprep.subr.bf16.mxu0 0
        %557 = vmatpush2.bf16.msra.mxu0 0
        %558 = vmatprep.subr.bf16.mxu0 0
        %559 = vmatpush2.bf16.msra.mxu0 0
        %560 = vmatprep.subr.bf16.mxu0 0
        %561 = vmatpush2.bf16.msra.mxu0 0
        %562 = vmatprep.subr.bf16.mxu0 0
        %563 = vmatpush2.bf16.msra.mxu0 0
        %564 = vmatprep.subr.bf16.mxu0 0
        %565 = vmatpush2.bf16.msra.mxu0 0
        %566 = vmatprep.subr.bf16.mxu0 0
        %567 = vmatpush2.bf16.msra.mxu0 0
        %568 = vmatprep.subr.bf16.mxu0 0
        %569 = vmatpush2.bf16.msra.mxu0 0
        %570 = vmatprep.subr.bf16.mxu0 0
        %571 = vmatpush2.bf16.msra.mxu0 0
        %572 = vmatprep.mubr.bf16.mxu0 0
        %573 = vmatmul.mubr.bf16.gmra.mxu0 %v468
        %v574 = vpop.f32.mrf.mxu0
        %v575 = vadd.f32 %v490, %v574
        %v576 = vpop.f32.mrf.mxu0
        %v577 = vpop.f32.mrf.mxu0
        %v578 = vpop.f32.mrf.mxu0
        %579 = vdwg.mxu0
        %vm580 = vcmask 72704
        %581 = vst.msk [vmem:[%s269] sm:$0xff] %vm580, %v575
        %s582 = sand.u32 %s181, 1
        %s583 = scalar_lea.sflag [#allocation3], %s582
        %s584 = sand.u32 %s181, 1
        %s585 = smul.addr %s584, 8
        %s586 = scalar_lea.vmem [#allocation2], %s585
        // Predicated region
        $region49: #{c620_op_forward.1} parent=47 // pred_check
          %p587 = pneg %p191
        $region50: #{c620_op_forward.1} parent=47 // pred_check_branch
          %589 = sbr.rel (%p587) target = $region52
        $region51: #{c620_op_forward.1} parent=47 // pred_region
          %s591 = ssub.s32 128, 128
          %592 = vsyncadd %s583, %s591
          %s593 = smul.addr %s21, 128
          %s594 = scalar_lea.hbm %s7, %s593
          %s596 = sshll.u32 %s586, 4
          %s597 = int_to_ptr.vmem [resolvable:$true] %s596
          %599 = dma.vmem_to_hbm [thread:$0]  %s597, 128, %s594, %s583
        $region52: #{c620_op_forward.1} parent=47 // pred_fallthru
          _
      $region48: #{c620_op_forward.1} parent=5 // pred_fallthru
        _
      %p600 = scmp.le.s32.totalorder 2, %s16
      // Predicated region
      $region53: #{c620_op_forward.1} parent=5 // pred_check
        %p601 = pneg %p600
      $region54: #{c620_op_forward.1} parent=5 // pred_check_branch
        %603 = sbr.rel (%p601) target = $region56
      $region55: #{c620_op_forward.1} parent=5 // pred_region
        %s604 = ssub.s32 %s16, 2
        // Predicated region
        $region57: #{c620_op_forward.1} parent=55 // pred_check
          %p605 = pneg %p197
        $region58: #{c620_op_forward.1} parent=55 // pred_check_branch
          %607 = sbr.rel (%p605) target = $region60
        $region59: #{c620_op_forward.1} parent=55 // pred_region
          %s608 = sand.u32 %s182, 1
          %s609 = scalar_lea.sflag [#allocation3], %s608
          %s610 = sand.u32 %s182, 1
          %s611 = smul.addr %s610, 8
          %s612 = scalar_lea.vmem [#allocation2], %s611
          %613 = dma.done %s609, 128
        $region60: #{c620_op_forward.1} parent=55 // pred_fallthru
          _
      $region56: #{c620_op_forward.1} parent=5 // pred_fallthru
        _
    $region6: #{c620_op_forward.1} parent=1 // loop_footer
      %s20 = sadd.s32 1, %s16
    $region7: #{c620_op_forward.1} parent=1 // loop_footer_branch
      %15 = sbr.rel target = $region3
    $region8: #{c620_op_forward.1} parent=1 // loop_exit
      _
    %614 = vsyncpa [#allocation3], 1
    %s615 = scalar_lea.sflag [#allocation3], 1
    %616 = vsyncpa %s615, 1

</llo_original>
